<compile_context>
chip_gen: v7x
topology: tpu7x:2x2x1
jax: 0.10.0
libtpu: 0.0.40
codegen_flags: <defaults>
</compile_context>

<pallas_src>
import functools

import jax
import jax.numpy as jnp
from jax.experimental import pallas as pl
from jax.experimental.pallas import tpu as pltpu


HIDDEN = 32          # fixed by the module definition (fc1 output dim)
LANE = 128           # TPU lane width
MAX_TB = 2048        # max batch-tile (lane axis); small per-block VMEM footprint


def _node_fn_kernel(xT_ref, epsT_ref, w1x_ref, w1e_ref, b1_ref, w2_ref, b2_ref,
                    out_ref):
    # xT_ref:  (Din, TB)      batch on lanes
    # epsT_ref:(1, TB)
    # w1x_ref: (32, Din)      fc1 weight, x part, pre-transposed
    # w1e_ref: (32, 1)        fc1 weight, eps column
    # b1_ref:  (32, 1)
    # w2_ref:  (Dout, 32)     fc2 weight, pre-transposed
    # b2_ref:  (Dout, 1)
    # out_ref: (Dout, TB)
    z1 = jnp.dot(w1x_ref[...], xT_ref[...], preferred_element_type=jnp.float32)
    z1 = z1 + w1e_ref[...] * epsT_ref[...] + b1_ref[...]   # rank-1 eps term + bias
    a1 = jnp.maximum(z1, 0.0)                               # ReLU on the VPU
    z2 = jnp.dot(w2_ref[...], a1, preferred_element_type=jnp.float32) + b2_ref[...]
    out_ref[...] = z2.astype(out_ref.dtype)


@jax.jit
def node_function_forward(x, eps, w1, b1, w2, b2):
    """x: (B, input_dim), eps: (B, 1). Returns (B, output_dim).

    Parameter layout: w1 (input_dim+1, 32), b1 (1, 32), w2 (32, output_dim),
    b2 (1, output_dim)  -- i.e. nn.Linear weights pre-transposed to
    (in_features, out_features).
    """
    B, Din = x.shape
    Dout = w2.shape[1]

    # ---- batch tiling (lane axis): pad B up to a multiple of the tile ----
    TB = min(MAX_TB, ((B + LANE - 1) // LANE) * LANE)
    Bp = ((B + TB - 1) // TB) * TB
    grid = (Bp // TB,)

    # ---- layout plumbing (tiny / fused by XLA): transpose & split weights ----
    xT = x.T                                   # (Din, B)
    epsT = eps.T                               # (1, B)
    if Bp != B:
        xT = jnp.pad(xT, ((0, 0), (0, Bp - B)))
        epsT = jnp.pad(epsT, ((0, 0), (0, Bp - B)))
    w1xT = w1[:Din, :].T                       # (32, Din)
    w1eT = w1[Din:Din + 1, :].T                # (32, 1)
    b1c = b1.reshape(HIDDEN, 1)                # (32, 1)
    w2T = w2.T                                 # (Dout, 32)
    b2c = b2.reshape(Dout, 1)                  # (Dout, 1)

    itemsize = jnp.dtype(x.dtype).itemsize
    cost = pl.CostEstimate(
        flops=2 * Bp * ((Din + 1) * HIDDEN + HIDDEN * Dout),
        transcendentals=0,
        bytes_accessed=(Bp * (Din + 1 + Dout)
                        + (Din + 1) * HIDDEN + HIDDEN
                        + HIDDEN * Dout + Dout) * itemsize,
    )

    outT = pl.pallas_call(
        _node_fn_kernel,
        out_shape=jax.ShapeDtypeStruct((Dout, Bp), x.dtype),
        grid=grid,
        in_specs=[
            pl.BlockSpec((Din, TB), lambda i: (0, i)),      # x.T tile
            pl.BlockSpec((1, TB), lambda i: (0, i)),        # eps.T tile
            pl.BlockSpec((HIDDEN, Din), lambda i: (0, 0)),  # weights: VMEM-resident
            pl.BlockSpec((HIDDEN, 1), lambda i: (0, 0)),
            pl.BlockSpec((HIDDEN, 1), lambda i: (0, 0)),
            pl.BlockSpec((Dout, HIDDEN), lambda i: (0, 0)),
            pl.BlockSpec((Dout, 1), lambda i: (0, 0)),
        ],
        out_specs=pl.BlockSpec((Dout, TB), lambda i: (0, i)),
        compiler_params=pltpu.CompilerParams(
            dimension_semantics=("parallel",),              # 2x on v7x's 2 TCs
        ),
        cost_estimate=cost,
    )(xT, epsT, w1xT, w1eT, b1c, w2T, b2c)

    return outT[:, :B].T                                    # back to (B, Dout)


def init_params(key, input_dim, output_dim, dtype=jnp.float32):
    """Deterministic init matching torch.nn.Linear's U(-1/sqrt(fan_in), +...)."""
    k1, k2, k3, k4 = jax.random.split(key, 4)
    fan1 = input_dim + 1
    bound1 = 1.0 / jnp.sqrt(fan1)
    w1 = jax.random.uniform(k1, (fan1, HIDDEN), dtype, -bound1, bound1)
    b1 = jax.random.uniform(k2, (1, HIDDEN), dtype, -bound1, bound1)
    fan2 = HIDDEN
    bound2 = 1.0 / jnp.sqrt(fan2)
    w2 = jax.random.uniform(k3, (fan2, output_dim), dtype, -bound2, bound2)
    b2 = jax.random.uniform(k4, (1, output_dim), dtype, -bound2, bound2)
    return w1, b1, w2, b2


if __name__ == "__main__":
    key = jax.random.PRNGKey(0)
    kx, ke, kp = jax.random.split(key, 3)

    batch, input_dim, output_dim = 8, 4, 4
    x = jax.random.normal(kx, (batch, input_dim), jnp.float32)
    eps = jax.random.normal(ke, (batch, 1), jnp.float32)
    w1, b1, w2, b2 = init_params(kp, input_dim, output_dim)

    out = node_function_forward(x, eps, w1, b1, w2, b2)
    out = jax.block_until_ready(out)

    # Pure-JAX reference check (original concat formulation).
    h_ref = jnp.concatenate([x, eps], axis=-1)
    ref = jnp.maximum(h_ref @ w1 + b1, 0.0) @ w2 + b2
    assert out.shape == (batch, output_dim)
    assert jnp.allclose(out, ref, atol=1e-5, rtol=1e-5)

    # Also exercise a batch that is not a multiple of the lane/tile width.
    batch2 = 300
    kx2, ke2 = jax.random.split(kx)
    x2 = jax.random.normal(kx2, (batch2, input_dim), jnp.float32)
    eps2 = jax.random.normal(ke2, (batch2, 1), jnp.float32)
    out2 = jax.block_until_ready(node_function_forward(x2, eps2, w1, b1, w2, b2))
    h2 = jnp.concatenate([x2, eps2], axis=-1)
    ref2 = jnp.maximum(h2 @ w1 + b1, 0.0) @ w2 + b2
    assert out2.shape == (batch2, output_dim)
    assert jnp.allclose(out2, ref2, atol=1e-5, rtol=1e-5)

    print("KERNEL_OK")
</pallas_src>

<mosaic_0001>
module attributes {stable_mosaic.version = 11 : i64} {
  func.func @_node_fn_kernel(%arg0: i32, %arg1: memref<4x128xf32, #tpu.memory_space<vmem>>, %arg2: memref<1x128xf32, #tpu.memory_space<vmem>>, %arg3: memref<32x4xf32, #tpu.memory_space<vmem>>, %arg4: memref<32x1xf32, #tpu.memory_space<vmem>>, %arg5: memref<32x1xf32, #tpu.memory_space<vmem>>, %arg6: memref<4x32xf32, #tpu.memory_space<vmem>>, %arg7: memref<4x1xf32, #tpu.memory_space<vmem>>, %arg8: memref<4x128xf32, #tpu.memory_space<vmem>>) attributes {dimension_semantics = [#tpu.dimension_semantics<parallel>], iteration_bounds = array<i64: 1>, scalar_prefetch = 0 : i64, scratch_operands = 0 : i64, tpu.core_type = #tpu.core_type<tc>, window_params = [{transform_indices = @transform_0, window_bounds = array<i64: 4, 128>}, {transform_indices = @transform_1, window_bounds = array<i64: 1, 128>}, {pipeline_mode = #tpu.pipeline_mode<synchronous>, transform_indices = @transform_2, window_bounds = array<i64: 32, 4>}, {pipeline_mode = #tpu.pipeline_mode<synchronous>, transform_indices = @transform_3, window_bounds = array<i64: 32, 1>}, {pipeline_mode = #tpu.pipeline_mode<synchronous>, transform_indices = @transform_4, window_bounds = array<i64: 32, 1>}, {pipeline_mode = #tpu.pipeline_mode<synchronous>, transform_indices = @transform_5, window_bounds = array<i64: 4, 32>}, {pipeline_mode = #tpu.pipeline_mode<synchronous>, transform_indices = @transform_6, window_bounds = array<i64: 4, 1>}, {transform_indices = @transform_7, window_bounds = array<i64: 4, 128>}]} {
    %c0 = arith.constant 0 : index
    %c0_0 = arith.constant 0 : index
    %0 = vector.load %arg3[%c0, %c0_0] : memref<32x4xf32, #tpu.memory_space<vmem>>, vector<32x4xf32>
    %c0_1 = arith.constant 0 : index
    %c0_2 = arith.constant 0 : index
    %1 = vector.load %arg1[%c0_1, %c0_2] : memref<4x128xf32, #tpu.memory_space<vmem>>, vector<4x128xf32>
    %cst = arith.constant dense<0.000000e+00> : vector<32x128xf32>
    %2 = tpu.matmul %0, %1, %cst {dimension_numbers = #tpu.dot_dimension_numbers<[1], [0], [0], [1], [0, 0, 1, 1], [], []>} : vector<32x4xf32>, vector<4x128xf32>, vector<32x128xf32> -> vector<32x128xf32>
    %c0_3 = arith.constant 0 : index
    %c0_4 = arith.constant 0 : index
    %3 = vector.load %arg4[%c0_3, %c0_4] : memref<32x1xf32, #tpu.memory_space<vmem>>, vector<32x1xf32>
    %c0_5 = arith.constant 0 : index
    %c0_6 = arith.constant 0 : index
    %4 = vector.load %arg2[%c0_5, %c0_6] : memref<1x128xf32, #tpu.memory_space<vmem>>, vector<1x128xf32>
    %5 = vector.broadcast %3 : vector<32x1xf32> to vector<32x128xf32>
    %6 = vector.broadcast %4 : vector<1x128xf32> to vector<32x128xf32>
    %7 = arith.mulf %5, %6 : vector<32x128xf32>
    %8 = arith.addf %2, %7 : vector<32x128xf32>
    %c0_7 = arith.constant 0 : index
    %c0_8 = arith.constant 0 : index
    %9 = vector.load %arg5[%c0_7, %c0_8] : memref<32x1xf32, #tpu.memory_space<vmem>>, vector<32x1xf32>
    %10 = vector.broadcast %9 : vector<32x1xf32> to vector<32x128xf32>
    %11 = arith.addf %8, %10 : vector<32x128xf32>
    %cst_9 = arith.constant 0.000000e+00 : f32
    %12 = vector.broadcast %cst_9 : f32 to vector<32x128xf32>
    %13 = arith.maximumf %11, %12 : vector<32x128xf32>
    %c0_10 = arith.constant 0 : index
    %c0_11 = arith.constant 0 : index
    %14 = vector.load %arg6[%c0_10, %c0_11] : memref<4x32xf32, #tpu.memory_space<vmem>>, vector<4x32xf32>
    %cst_12 = arith.constant dense<0.000000e+00> : vector<4x128xf32>
    %15 = tpu.matmul %14, %13, %cst_12 {dimension_numbers = #tpu.dot_dimension_numbers<[1], [0], [0], [1], [0, 0, 1, 1], [], []>} : vector<4x32xf32>, vector<32x128xf32>, vector<4x128xf32> -> vector<4x128xf32>
    %c0_13 = arith.constant 0 : index
    %c0_14 = arith.constant 0 : index
    %16 = vector.load %arg7[%c0_13, %c0_14] : memref<4x1xf32, #tpu.memory_space<vmem>>, vector<4x1xf32>
    %17 = vector.broadcast %16 : vector<4x1xf32> to vector<4x128xf32>
    %18 = arith.addf %15, %17 : vector<4x128xf32>
    %c0_15 = arith.constant 0 : index
    %c0_16 = arith.constant 0 : index
    %19 = vector.load %arg8[%c0_15, %c0_16] : memref<4x128xf32, #tpu.memory_space<vmem>>, vector<4x128xf32>
    tpu.vector_store %arg8[%c0_15, %c0_16], %18 {strides = array<i32>} : memref<4x128xf32, #tpu.memory_space<vmem>>, vector<4x128xf32>,
    return
  }
  func.func @transform_0(%arg0: i32) -> (i32, i32) {
    %c0_i32 = arith.constant 0 : i32
    %c0_i32_0 = arith.constant 0 : i32
    return %c0_i32, %arg0 : i32, i32
  }
  func.func @transform_1(%arg0: i32) -> (i32, i32) {
    %c0_i32 = arith.constant 0 : i32
    %c0_i32_0 = arith.constant 0 : i32
    return %c0_i32, %arg0 : i32, i32
  }
  func.func @transform_2(%arg0: i32) -> (i32, i32) {
    %c0_i32 = arith.constant 0 : i32
    %c0_i32_0 = arith.constant 0 : i32
    %c0_i32_1 = arith.constant 0 : i32
    return %c0_i32, %c0_i32_0 : i32, i32
  }
  func.func @transform_3(%arg0: i32) -> (i32, i32) {
    %c0_i32 = arith.constant 0 : i32
    %c0_i32_0 = arith.constant 0 : i32
    %c0_i32_1 = arith.constant 0 : i32
    return %c0_i32, %c0_i32_0 : i32, i32
  }
  func.func @transform_4(%arg0: i32) -> (i32, i32) {
    %c0_i32 = arith.constant 0 : i32
    %c0_i32_0 = arith.constant 0 : i32
    %c0_i32_1 = arith.constant 0 : i32
    return %c0_i32, %c0_i32_0 : i32, i32
  }
  func.func @transform_5(%arg0: i32) -> (i32, i32) {
    %c0_i32 = arith.constant 0 : i32
    %c0_i32_0 = arith.constant 0 : i32
    %c0_i32_1 = arith.constant 0 : i32
    return %c0_i32, %c0_i32_0 : i32, i32
  }
  func.func @transform_6(%arg0: i32) -> (i32, i32) {
    %c0_i32 = arith.constant 0 : i32
    %c0_i32_0 = arith.constant 0 : i32
    %c0_i32_1 = arith.constant 0 : i32
    return %c0_i32, %c0_i32_0 : i32, i32
  }
  func.func @transform_7(%arg0: i32) -> (i32, i32) {
    %c0_i32 = arith.constant 0 : i32
    %c0_i32_0 = arith.constant 0 : i32
    return %c0_i32, %arg0 : i32, i32
  }
}

</mosaic_0001>

<llo_original>
// kernel: node_function_forward.1
$region0: #{node_function_forward.1}
  #allocation0 [shape = 'u32[]', space=smem, size = 0x4, offset = 0x4, fixed_abs, tag = 'smem constant byte address 0x4 - core index']
  #allocation1 [shape = 'u32[144,128]{1,0:T(1,128)}', space=vmem, size = 0x12000, scoped, tag = 'internal scratch']
  %s0 = inlined_call_operand.vmem [shape: f32[4,128], index: 0, kind: input, shape index: {}]
  %s1 = inlined_call_operand.vmem [shape: f32[1,128], index: 1, kind: input, shape index: {}]
  %s2 = inlined_call_operand.vmem [shape: f32[32,4], index: 2, kind: input, shape index: {}]
  %s3 = inlined_call_operand.vmem [shape: f32[32,1], index: 3, kind: input, shape index: {}]
  %s4 = inlined_call_operand.vmem [shape: f32[32,1], index: 4, kind: input, shape index: {}]
  %s5 = inlined_call_operand.vmem [shape: f32[4,32], index: 5, kind: input, shape index: {}]
  %s6 = inlined_call_operand.vmem [shape: f32[4,1], index: 6, kind: input, shape index: {}]
  %s7 = inlined_call_operand.vmem [shape: f32[4,128], index: 7, kind: output, shape index: {}]
  %s8 = sld [smem:[#allocation0]]
  $region38: #{node_function_forward.1} parent=0
    _
  %s10 = ssub.s32 1, %s8
  %s11 = scalar_select 0, %s10, %s8
  // Predicated region
  $region2: #{node_function_forward.1} parent=0 // pred_check
    _
  $region3: #{node_function_forward.1} parent=0 // pred_check_branch
    %13 = sbr.rel (0) target = $region5
  $region4: #{node_function_forward.1} parent=0 // pred_region
    _
  $region5: #{node_function_forward.1} parent=0 // pred_fallthru
    _
  // Predicated region
  $region6: #{node_function_forward.1} parent=0 // pred_check
    _
  $region7: #{node_function_forward.1} parent=0 // pred_check_branch
    %15 = sbr.rel (0) target = $region9
  $region8: #{node_function_forward.1} parent=0 // pred_region
    _
  $region9: #{node_function_forward.1} parent=0 // pred_fallthru
    _
  // Predicated region
  $region10: #{node_function_forward.1} parent=0 // pred_check
    _
  $region11: #{node_function_forward.1} parent=0 // pred_check_branch
    %17 = sbr.rel (0) target = $region13
  $region12: #{node_function_forward.1} parent=0 // pred_region
    _
  $region13: #{node_function_forward.1} parent=0 // pred_fallthru
    _
  // Predicated region
  $region14: #{node_function_forward.1} parent=0 // pred_check
    _
  $region15: #{node_function_forward.1} parent=0 // pred_check_branch
    %19 = sbr.rel (0) target = $region17
  $region16: #{node_function_forward.1} parent=0 // pred_region
    _
  $region17: #{node_function_forward.1} parent=0 // pred_fallthru
    _
  // Predicated region
  $region18: #{node_function_forward.1} parent=0 // pred_check
    _
  $region19: #{node_function_forward.1} parent=0 // pred_check_branch
    %21 = sbr.rel (0) target = $region21
  $region20: #{node_function_forward.1} parent=0 // pred_region
    _
  $region21: #{node_function_forward.1} parent=0 // pred_fallthru
    _
  // Predicated region
  $region22: #{node_function_forward.1} parent=0 // pred_check
    _
  $region23: #{node_function_forward.1} parent=0 // pred_check_branch
    %23 = sbr.rel (0) target = $region25
  $region24: #{node_function_forward.1} parent=0 // pred_region
    _
  $region25: #{node_function_forward.1} parent=0 // pred_fallthru
    _
  // Predicated region
  $region26: #{node_function_forward.1} parent=0 // pred_check
    _
  $region27: #{node_function_forward.1} parent=0 // pred_check_branch
    %25 = sbr.rel (0) target = $region29
  $region28: #{node_function_forward.1} parent=0 // pred_region
    _
  $region29: #{node_function_forward.1} parent=0 // pred_fallthru
    _
  %v26 = vld [vmem:[%s2] sm:$0xff]
  %v27 = vld [vmem:[%s2 + $0x8] sm:$0xff]
  %v28 = vld [vmem:[%s2 + $0x10] sm:$0xff]
  %v29 = vld [vmem:[%s2 + $0x18] sm:$0xff]
  %v30 = vld [vmem:[%s0] sm:$0xf]
  %v31 = vld [vmem:[%s3] sm:$0xff]
  %v32 = vld [vmem:[%s3 + $0x8] sm:$0xff]
  %v33 = vld [vmem:[%s3 + $0x10] sm:$0xff]
  %v34 = vld [vmem:[%s3 + $0x18] sm:$0xff]
  %v35 = vld [vmem:[%s1] sm:$0x1]
  %37 = vset.pattern.permute.xlu0 0
  %38 = vperm.xlu0 %37, %v31
  %v39 = vpop.permute.xlu0 %38
  %42 = vset.pattern.permute.xlu0 0
  %43 = vperm.xlu0 %42, %v32
  %v44 = vpop.permute.xlu0 %43
  %47 = vset.pattern.permute.xlu0 0
  %48 = vperm.xlu0 %47, %v33
  %v49 = vpop.permute.xlu0 %48
  %52 = vset.pattern.permute.xlu0 0
  %53 = vperm.xlu0 %52, %v34
  %v54 = vpop.permute.xlu0 %53
  %v57 = vlaneseq
  %v58 = vshrl.u32 %v57, 7
  %v59 = vsub.s32 0, %v58
  %v60 = vrot.slane %v35, %v59
  %v62 = vmul.f32 %v39, %v60
  %v63 = vmul.f32 %v44, %v60
  %v64 = vmul.f32 %v49, %v60
  %v65 = vmul.f32 %v54, %v60
  %vm66 = vcmask 31744
  %v68 = vsel %vm66, %v26, 0
  %v71 = vsel %vm66, %v27, 0
  %v74 = vsel %vm66, %v28, 0
  %v77 = vsel %vm66, %v29, 0
  %vm79 = vcmask 1043456
  %v81 = vsel %vm79, %v30, 0
  %83 = vmatprep.subr.mxu0 0.0
  %84 = vmatpush1.msra.mxu0 %v81
  %85 = vmatprep.subr.mxu0 0.0
  %86 = vmatpush1.msra.mxu0 0.0
  %87 = vmatprep.subr.mxu0 0.0
  %88 = vmatpush1.msra.mxu0 0.0
  %89 = vmatprep.subr.mxu0 0.0
  %90 = vmatpush1.msra.mxu0 0.0
  %91 = vmatprep.subr.mxu0 0.0
  %92 = vmatpush1.msra.mxu0 0.0
  %93 = vmatprep.subr.mxu0 0.0
  %94 = vmatpush1.msra.mxu0 0.0
  %95 = vmatprep.subr.mxu0 0.0
  %96 = vmatpush1.msra.mxu0 0.0
  %97 = vmatprep.subr.mxu0 0.0
  %98 = vmatpush1.msra.mxu0 0.0
  %99 = vmatprep.subr.mxu0 0.0
  %100 = vmatpush1.msra.mxu0 0.0
  %101 = vmatprep.subr.mxu0 0.0
  %102 = vmatpush1.msra.mxu0 0.0
  %103 = vmatprep.subr.mxu0 0.0
  %104 = vmatpush1.msra.mxu0 0.0
  %105 = vmatprep.subr.mxu0 0.0
  %106 = vmatpush1.msra.mxu0 0.0
  %107 = vmatprep.subr.mxu0 0.0
  %108 = vmatpush1.msra.mxu0 0.0
  %109 = vmatprep.subr.mxu0 0.0
  %110 = vmatpush1.msra.mxu0 0.0
  %111 = vmatprep.subr.mxu0 0.0
  %112 = vmatpush1.msra.mxu0 0.0
  %113 = vmatprep.subr.mxu0 0.0
  %114 = vmatpush1.msra.mxu0 0.0
  %115 = vmatprep.subr.mxu0 0.0
  %116 = vmatpush1.msra.mxu0 0.0
  %117 = vmatprep.subr.mxu0 0.0
  %118 = vmatpush1.msra.mxu0 0.0
  %119 = vmatprep.subr.mxu0 0.0
  %120 = vmatpush1.msra.mxu0 0.0
  %121 = vmatprep.subr.mxu0 0.0
  %122 = vmatpush1.msra.mxu0 0.0
  %123 = vmatprep.subr.mxu0 0.0
  %124 = vmatpush1.msra.mxu0 0.0
  %125 = vmatprep.subr.mxu0 0.0
  %126 = vmatpush1.msra.mxu0 0.0
  %127 = vmatprep.subr.mxu0 0.0
  %128 = vmatpush1.msra.mxu0 0.0
  %129 = vmatprep.subr.mxu0 0.0
  %130 = vmatpush1.msra.mxu0 0.0
  %131 = vmatprep.subr.mxu0 0.0
  %132 = vmatpush1.msra.mxu0 0.0
  %133 = vmatprep.subr.mxu0 0.0
  %134 = vmatpush1.msra.mxu0 0.0
  %135 = vmatprep.subr.mxu0 0.0
  %136 = vmatpush1.msra.mxu0 0.0
  %137 = vmatprep.subr.mxu0 0.0
  %138 = vmatpush1.msra.mxu0 0.0
  %139 = vmatprep.subr.mxu0 0.0
  %140 = vmatpush1.msra.mxu0 0.0
  %141 = vmatprep.subr.mxu0 0.0
  %142 = vmatpush1.msra.mxu0 0.0
  %143 = vmatprep.subr.mxu0 0.0
  %144 = vmatpush1.msra.mxu0 0.0
  %145 = vmatprep.subr.mxu0 0.0
  %146 = vmatpush1.msra.mxu0 0.0
  %147 = vmatprep.mubr.f32.mxu0 0.0
  %148 = vmatmul.mubr.f32.gmra.mrb[0].mxu0 %v68
  %v149 = vpop.f32.mrb[0].mxu0
  %v150 = vadd.f32 %v62, %v149
  %v151 = vpop.f32.mrb[0].mxu0
  %152 = vmatprep.mubr.f32.mxu0 0.0
  %153 = vmatmul.mubr.f32.gmra.mrb[0].mxu0 %v71
  %v154 = vpop.f32.mrb[0].mxu0
  %v155 = vadd.f32 %v63, %v154
  %v156 = vpop.f32.mrb[0].mxu0
  %157 = vmatprep.mubr.f32.mxu0 0.0
  %158 = vmatmul.mubr.f32.gmra.mrb[0].mxu0 %v74
  %v159 = vpop.f32.mrb[0].mxu0
  %v160 = vadd.f32 %v64, %v159
  %v161 = vpop.f32.mrb[0].mxu0
  %162 = vmatprep.mubr.f32.mxu0 0.0
  %163 = vmatmul.mubr.f32.gmra.mrb[0].mxu0 %v77
  %v164 = vpop.f32.mrb[0].mxu0
  %v165 = vadd.f32 %v65, %v164
  %v166 = vpop.f32.mrb[0].mxu0
  %167 = vdwg.mxu0
  %v168 = vld [vmem:[%s4] sm:$0xff]
  %v169 = vld [vmem:[%s4 + $0x8] sm:$0xff]
  %v170 = vld [vmem:[%s4 + $0x10] sm:$0xff]
  %v171 = vld [vmem:[%s4 + $0x18] sm:$0xff]
  %173 = vset.pattern.permute.xlu0 0
  %174 = vperm.xlu0 %173, %v168
  %v175 = vpop.permute.xlu0 %174
  %178 = vset.pattern.permute.xlu0 0
  %179 = vperm.xlu0 %178, %v169
  %v180 = vpop.permute.xlu0 %179
  %183 = vset.pattern.permute.xlu0 0
  %184 = vperm.xlu0 %183, %v170
  %v185 = vpop.permute.xlu0 %184
  %188 = vset.pattern.permute.xlu0 0
  %189 = vperm.xlu0 %188, %v171
  %v190 = vpop.permute.xlu0 %189
  %v192 = vadd.f32 %v150, %v175
  %v193 = vadd.f32 %v155, %v180
  %v194 = vadd.f32 %v160, %v185
  %v195 = vadd.f32 %v165, %v190
  %v196 = vmax.f32 %v192, 0.0
  %v197 = vmax.f32 %v193, 0.0
  %v198 = vmax.f32 %v194, 0.0
  %v199 = vmax.f32 %v195, 0.0
  %v200 = vld [vmem:[%s5] sm:$0xf]
  %v201 = vld [vmem:[%s6] sm:$0xf]
  %203 = vset.pattern.permute.xlu0 0
  %204 = vperm.xlu0 %203, %v201
  %v205 = vpop.permute.xlu0 %204
  %vm207 = vcmask 261120
  %v209 = vsel %vm207, %v200, 0
  %211 = vmatprep.subr.mxu0 0.0
  %212 = vmatpush1.msra.mxu0 %v196
  %213 = vmatprep.subr.mxu0 0.0
  %214 = vmatpush1.msra.mxu0 %v197
  %215 = vmatprep.subr.mxu0 0.0
  %216 = vmatpush1.msra.mxu0 %v198
  %217 = vmatprep.subr.mxu0 0.0
  %218 = vmatpush1.msra.mxu0 %v199
  %219 = vmatprep.subr.mxu0 0.0
  %220 = vmatpush1.msra.mxu0 0.0
  %221 = vmatprep.subr.mxu0 0.0
  %222 = vmatpush1.msra.mxu0 0.0
  %223 = vmatprep.subr.mxu0 0.0
  %224 = vmatpush1.msra.mxu0 0.0
  %225 = vmatprep.subr.mxu0 0.0
  %226 = vmatpush1.msra.mxu0 0.0
  %227 = vmatprep.subr.mxu0 0.0
  %228 = vmatpush1.msra.mxu0 0.0
  %229 = vmatprep.subr.mxu0 0.0
  %230 = vmatpush1.msra.mxu0 0.0
  %231 = vmatprep.subr.mxu0 0.0
  %232 = vmatpush1.msra.mxu0 0.0
  %233 = vmatprep.subr.mxu0 0.0
  %234 = vmatpush1.msra.mxu0 0.0
  %235 = vmatprep.subr.mxu0 0.0
  %236 = vmatpush1.msra.mxu0 0.0
  %237 = vmatprep.subr.mxu0 0.0
  %238 = vmatpush1.msra.mxu0 0.0
  %239 = vmatprep.subr.mxu0 0.0
  %240 = vmatpush1.msra.mxu0 0.0
  %241 = vmatprep.subr.mxu0 0.0
  %242 = vmatpush1.msra.mxu0 0.0
  %243 = vmatprep.subr.mxu0 0.0
  %244 = vmatpush1.msra.mxu0 0.0
  %245 = vmatprep.subr.mxu0 0.0
  %246 = vmatpush1.msra.mxu0 0.0
  %247 = vmatprep.subr.mxu0 0.0
  %248 = vmatpush1.msra.mxu0 0.0
  %249 = vmatprep.subr.mxu0 0.0
  %250 = vmatpush1.msra.mxu0 0.0
  %251 = vmatprep.subr.mxu0 0.0
  %252 = vmatpush1.msra.mxu0 0.0
  %253 = vmatprep.subr.mxu0 0.0
  %254 = vmatpush1.msra.mxu0 0.0
  %255 = vmatprep.subr.mxu0 0.0
  %256 = vmatpush1.msra.mxu0 0.0
  %257 = vmatprep.subr.mxu0 0.0
  %258 = vmatpush1.msra.mxu0 0.0
  %259 = vmatprep.subr.mxu0 0.0
  %260 = vmatpush1.msra.mxu0 0.0
  %261 = vmatprep.subr.mxu0 0.0
  %262 = vmatpush1.msra.mxu0 0.0
  %263 = vmatprep.subr.mxu0 0.0
  %264 = vmatpush1.msra.mxu0 0.0
  %265 = vmatprep.subr.mxu0 0.0
  %266 = vmatpush1.msra.mxu0 0.0
  %267 = vmatprep.subr.mxu0 0.0
  %268 = vmatpush1.msra.mxu0 0.0
  %269 = vmatprep.subr.mxu0 0.0
  %270 = vmatpush1.msra.mxu0 0.0
  %271 = vmatprep.subr.mxu0 0.0
  %272 = vmatpush1.msra.mxu0 0.0
  %273 = vmatprep.subr.mxu0 0.0
  %274 = vmatpush1.msra.mxu0 0.0
  %275 = vmatprep.mubr.f32.mxu0 0.0
  %276 = vmatmul.mubr.f32.gmra.mrb[0].mxu0 %v209
  %v277 = vpop.f32.mrb[0].mxu0
  %v278 = vadd.f32 %v205, %v277
  %v279 = vpop.f32.mrb[0].mxu0
  %280 = vdwg.mxu0
  %281 = vst [vmem:[%s7] sm:$0xf] %v278
  // Predicated region
  $region30: #{node_function_forward.1} parent=0 // pred_check
    _
  $region31: #{node_function_forward.1} parent=0 // pred_check_branch
    %283 = sbr.rel (0) target = $region33
  $region32: #{node_function_forward.1} parent=0 // pred_region
    _
  $region33: #{node_function_forward.1} parent=0 // pred_fallthru
    _
  // Predicated region
  $region34: #{node_function_forward.1} parent=0 // pred_check
    _
  $region35: #{node_function_forward.1} parent=0 // pred_check_branch
    %285 = sbr.rel (0) target = $region37
  $region36: #{node_function_forward.1} parent=0 // pred_region
    _
  $region37: #{node_function_forward.1} parent=0 // pred_fallthru
    _

</llo_original>
